<compile_context>
chip_gen: v6e
topology: v6e:2x2x1
jax: 0.10.0
libtpu: 0.0.40
codegen_flags: <defaults>
</compile_context>

<pallas_src>
import math
from typing import NamedTuple, Sequence

import jax
import jax.numpy as jnp
from jax.experimental import pallas as pl
from jax.experimental.pallas import tpu as pltpu

_LANES = 128
_SUBLANES = 8
_DEFAULT_BLOCK_ROWS = 8192          # 4 MiB f32 per buffer: ~90%+ of HBM roofline
_CHUNK_ROWS = 1024                  # in-kernel compute chunk (bounds VMEM temps)
_VMEM_HEADROOM = 8 * 1024 * 1024    # temporaries + outputs + slack
_NUM_SPLITS = 2                     # leading "parallel" grid axis (2 TCs on v7x)


class RateDistortionLoss(NamedTuple):
    distortion: jax.Array
    rate: jax.Array
    rate_distortion: jax.Array


# --------------------------- host-side layout helpers ---------------------------

def _round_up8(n: int) -> int:
    return -(-n // _SUBLANES) * _SUBLANES


def _to_rows(a: jax.Array, pad_value: float) -> jax.Array:
    """Flatten to (rows, 128).  Pads (one copy) only when numel % 128 != 0;
    ragged rows / partial blocks are masked in-kernel instead of padded."""
    flat = jnp.ravel(a)
    n = flat.shape[0]
    pad = (-n) % _LANES
    if pad:
        # TODO(synk): a fully copy-free tail needs a 1-D pl.ANY ref + manual tail
        # DMA; here the (rare) numel % 128 != 0 case still copies the tensor once.
        flat = jnp.concatenate([flat, jnp.full((pad,), pad_value, dtype=flat.dtype)])
    return flat.reshape(-1, _LANES)


def _vmem_limit_bytes() -> int:
    cap = None
    try:
        info = pltpu.get_tpu_info()
        for name in ("vmem_capacity_bytes", "vmem_bytes", "vmem_size_bytes"):
            v = getattr(info, name, None)
            if v:
                cap = int(v)
                break
    except Exception:
        cap = None
    if not cap:
        cap = 64 * 1024 * 1024      # conservative fallback (v7x per-core VMEM)
    # ~75% of physical: 96 MiB on v5e/v6e (128 MiB), 48 MiB on v7x (64 MiB).
    return int(cap * 3 // 4)


def _pick_tms(rows, input_budget, requested_rows):
    """Block rows per tensor.  Probability tensors are clamped to their own row
    count first (they are usually tiny); the remaining budget goes to x_hat/x."""
    per_row = 2 * _LANES * 4                     # double-buffered f32 bytes / row
    target = max(_SUBLANES, (requested_rows // _SUBLANES) * _SUBLANES)

    tms_p = [_round_up8(min(r, target)) for r in rows[1:]]
    p_cost = sum(t * per_row for t in tms_p)
    if tms_p and p_cost > input_budget // 2:
        cap_p = (input_budget // 2) // (len(tms_p) * per_row)
        cap_p = max(_SUBLANES, (cap_p // _SUBLANES) * _SUBLANES)
        tms_p = [_round_up8(min(r, cap_p)) for r in rows[1:]]
        p_cost = sum(t * per_row for t in tms_p)

    sse_budget = max(0, input_budget - p_cost)
    cap_sse = sse_budget // (2 * per_row)        # x_hat and x share the row count
    cap_sse = max(_SUBLANES, (cap_sse // _SUBLANES) * _SUBLANES)
    tm_sse = _round_up8(min(rows[0], min(target, cap_sse)))
    return [tm_sse] + tms_p


def _build_schedules(num_blocks, n_splits):
    """Per-core step schedules.

    kinds[c][s] = active tensor id (-1 = padding/no-op); cols[t][c][s] = block
    index tensor t's BlockSpec presents at (core c, step s).  Inactive tensors
    hold their previous block index so the pipeline elides the re-DMA.  Each
    tensor's blocks are split contiguously across the n_splits cores.
    """
    n_t = len(num_blocks)
    kinds = []
    cols_per_core = []
    for c in range(n_splits):
        k_c = []
        cols_c = [[] for _ in range(n_t)]
        held = [min((c * nb) // n_splits, nb - 1) for nb in num_blocks]
        for t, nb in enumerate(num_blocks):
            lo = (c * nb) // n_splits
            hi = ((c + 1) * nb) // n_splits
            for b in range(lo, hi):
                held[t] = b
                k_c.append(t)
                for u in range(n_t):
                    cols_c[u].append(held[u])
        kinds.append(k_c)
        cols_per_core.append(cols_c)
    steps = max(1, max(len(k) for k in kinds))
    for c in range(n_splits):
        pad = steps - len(kinds[c])
        if pad:
            kinds[c].extend([-1] * pad)
            for u in range(n_t):
                col = cols_per_core[c][u]
                last = col[-1] if col else min((c * num_blocks[u]) // n_splits,
                                               num_blocks[u] - 1)
                col.extend([last] * pad)
    cols = [[cols_per_core[c][u] for c in range(n_splits)] for u in range(n_t)]
    return kinds, cols, steps


# --------------------------------- index maps -----------------------------------

def _sse_index_map(c, i, kind_ref, bsse_ref, *bk_refs):
    del kind_ref, bk_refs
    return (bsse_ref[c, i], 0)


def _p_index_map(k):
    def imap(c, i, kind_ref, bsse_ref, *bk_refs):
        del kind_ref, bsse_ref
        return (bk_refs[k][c, i], 0)
    return imap


def _out_index_map(c, i, *_):
    return (c, 0, 0)


# ----------------------------------- kernel -------------------------------------

def _block_partial_sum(tm, chunk_vals):
    """Reduce a (tm, 128) block to an (8, 128) partial sum in bounded chunks."""
    chunk = min(tm, _CHUNK_ROWS)

    def chunk_sum(start, nrows):
        v = chunk_vals(start, nrows)
        # (nrows,128) -> (nrows//8, 8, 128): sublane-aligned VPU adds, no XLU.
        return v.reshape(nrows // _SUBLANES, _SUBLANES, _LANES).sum(axis=0)

    n_full = tm // chunk
    rem = tm - n_full * chunk
    if n_full == 1 and rem == 0:
        return chunk_sum(0, chunk)
    acc = jnp.zeros((_SUBLANES, _LANES), jnp.float32)
    if n_full:
        def body(ci, a):
            start = pl.multiple_of(ci * chunk, chunk)
            return a + chunk_sum(start, chunk)
        acc = jax.lax.fori_loop(0, n_full, body, acc)
    if rem:
        acc = acc + chunk_sum(n_full * chunk, rem)
    return acc


def _make_kernel(n_p, tms, rows):
    tm_sse, rows_sse = tms[0], rows[0]

    def kernel(*args):
        # scalar prefetch: kind, blk_sse, blk_p[0..n_p-1]  (each (splits, steps))
        kind_ref = args[0]
        bsse_ref = args[1]
        bk_refs = args[2:2 + n_p]
        # inputs: x_hat, x, p_0..p_{n_p-1}
        xh_ref = args[2 + n_p]
        x_ref = args[3 + n_p]
        p_refs = args[4 + n_p:4 + 2 * n_p]
        # outputs (VMEM-resident accumulators: constant index map within a core)
        sse_out = args[4 + 2 * n_p]
        log_out = args[5 + 2 * n_p]

        c = pl.program_id(0)
        i = pl.program_id(1)

        @pl.when(i == 0)
        def _init():
            sse_out[0, :, :] = jnp.zeros((_SUBLANES, _LANES), jnp.float32)
            log_out[0, :, :] = jnp.zeros((_SUBLANES, _LANES), jnp.float32)

        kind = kind_ref[c, i]

        # ---------------------------- SSE over (x_hat, x) ----------------------------
        blk_sse = bsse_ref[c, i]

        def sse_vals(masked):
            def chunk_vals(start, nrows):
                xh = xh_ref[pl.ds(start, nrows), :]
                xv = x_ref[pl.ds(start, nrows), :]
                if xh.dtype != jnp.float32:
                    xh = xh.astype(jnp.float32)
                if xv.dtype != jnp.float32:
                    xv = xv.astype(jnp.float32)
                d = xh - xv
                sq = d * d
                if masked:
                    row = (jax.lax.broadcasted_iota(jnp.int32, (nrows, _LANES), 0)
                           + blk_sse * tm_sse + start)
                    sq = jnp.where(row < rows_sse, sq, jnp.float32(0.0))
                return sq
            return chunk_vals

        def emit_sse(pred, masked):
            @pl.when(pred)
            def _():
                sse_out[0, :, :] += _block_partial_sum(tm_sse, sse_vals(masked))

        nb_sse = -(-rows_sse // tm_sse)
        if rows_sse % tm_sse == 0:
            emit_sse(kind == 0, masked=False)
        else:
            # masking only runs on the single partial block
            if nb_sse > 1:
                emit_sse(jnp.logical_and(kind == 0, blk_sse < nb_sse - 1), False)
            emit_sse(jnp.logical_and(kind == 0, blk_sse == nb_sse - 1), True)

        # ---------------- sum(log(p)) over all probability tensors ----------------
        for k in range(n_p):
            tm_k, rows_k = tms[1 + k], rows[1 + k]
            blk_k = bk_refs[k][c, i]
            p_ref = p_refs[k]
            tid = k + 1

            def p_vals(masked, p_ref=p_ref, blk_k=blk_k, tm_k=tm_k, rows_k=rows_k):
                def chunk_vals(start, nrows):
                    p = p_ref[pl.ds(start, nrows), :]
                    if p.dtype != jnp.float32:
                        p = p.astype(jnp.float32)
                    if masked:
                        # mask BEFORE log: out-of-bounds rows hold unspecified
                        # data; log(garbage <= 0) would poison the rate term.
                        row = (jax.lax.broadcasted_iota(jnp.int32, (nrows, _LANES), 0)
                               + blk_k * tm_k + start)
                        p = jnp.where(row < rows_k, p, jnp.float32(1.0))
                    return jnp.log(p)
                return chunk_vals

            def emit_p(pred, masked, tm_k=tm_k, p_vals=p_vals):
                @pl.when(pred)
                def _():
                    log_out[0, :, :] += _block_partial_sum(tm_k, p_vals(masked))

            nb_k = -(-rows_k // tm_k)
            if rows_k % tm_k == 0:
                emit_p(kind == tid, masked=False)
            else:
                if nb_k > 1:
                    emit_p(jnp.logical_and(kind == tid, blk_k < nb_k - 1), False)
                emit_p(jnp.logical_and(kind == tid, blk_k == nb_k - 1), True)

    return kernel


# --------------------------------- fused wrapper ---------------------------------

def _fused_partial_sums(x_hat, x, probabilities, requested_block_rows):
    if x_hat.shape != x.shape:
        raise ValueError("x_hat and x must have the same shape.")
    n_p = len(probabilities)

    xh2 = _to_rows(x_hat, 0.0)
    x2 = _to_rows(x, 0.0)
    ps2 = [_to_rows(p, 1.0) for p in probabilities]

    rows = [x2.shape[0]] + [p.shape[0] for p in ps2]

    vmem_limit = _vmem_limit_bytes()
    input_budget = max(8 * 1024 * 1024, vmem_limit - _VMEM_HEADROOM)
    tms = _pick_tms(rows, input_budget, requested_block_rows)
    num_blocks = [-(-r // t) for r, t in zip(rows, tms)]

    kinds, cols, steps = _build_schedules(num_blocks, _NUM_SPLITS)
    kind_arr = jnp.asarray(kinds, dtype=jnp.int32)               # (splits, steps)
    blk_arrs = [jnp.asarray(cc, dtype=jnp.int32) for cc in cols]  # each (splits, steps)

    kernel = _make_kernel(n_p, tms, rows)

    # TODO(synk): if a trace still shows exposed DMA at kind-transition steps,
    # sweep pipeline_mode=pl.Buffered(3) on the x_hat/x specs.
    in_specs = (
        [pl.BlockSpec((tms[0], _LANES), _sse_index_map),   # x_hat
         pl.BlockSpec((tms[0], _LANES), _sse_index_map)]   # x
        + [pl.BlockSpec((tms[1 + k], _LANES), _p_index_map(k)) for k in range(n_p)]
    )
    out_specs = (pl.BlockSpec((1, _SUBLANES, _LANES), _out_index_map),
                 pl.BlockSpec((1, _SUBLANES, _LANES), _out_index_map))
    out_shape = (jax.ShapeDtypeStruct((_NUM_SPLITS, _SUBLANES, _LANES), jnp.float32),
                 jax.ShapeDtypeStruct((_NUM_SPLITS, _SUBLANES, _LANES), jnp.float32))

    p_elems = sum(int(p.size) for p in probabilities)
    bytes_accessed = int(
        x_hat.size * x_hat.dtype.itemsize + x.size * x.dtype.itemsize
        + sum(int(p.size) * p.dtype.itemsize for p in probabilities)
        + 2 * _NUM_SPLITS * _SUBLANES * _LANES * 4)
    cost = pl.CostEstimate(flops=int(3 * x.size + 2 * p_elems),
                           transcendentals=int(p_elems),
                           bytes_accessed=bytes_accessed)

    sse_part, log_part = pl.pallas_call(
        kernel,
        out_shape=out_shape,
        grid_spec=pltpu.PrefetchScalarGridSpec(
            num_scalar_prefetch=2 + n_p,
            grid=(_NUM_SPLITS, steps),
            in_specs=in_specs,
            out_specs=out_specs,
        ),
        compiler_params=pltpu.CompilerParams(
            dimension_semantics=("parallel", "arbitrary"),   # TC split on v7x
            vmem_limit_bytes=vmem_limit),
        cost_estimate=cost,
    )(kind_arr, *blk_arrs, xh2, x2, *ps2)

    # Single cross-lane/sublane/core reduction, done once outside the kernel.
    return jnp.sum(sse_part), jnp.sum(log_part)


# ----------------------------------- module --------------------------------------

class RateMSEDistortionLossPallas:
    """Pallas/TPU implementation of neuralcompression RateMSEDistortionLoss.

    Inputs may be passed in bf16 (or any narrow dtype); the cast to f32 happens
    in-kernel on spare VPU slots, halving HBM traffic for this bandwidth-bound op.
    """

    def __init__(self, trade_off: float = 0.01, maximum: int = 255,
                 block_rows: int = _DEFAULT_BLOCK_ROWS):
        if block_rows < _SUBLANES or block_rows % _SUBLANES != 0:
            raise ValueError("block_rows must be a positive multiple of 8.")
        self.trade_off = trade_off
        self.maximum = maximum
        self.block_rows = block_rows

    def __call__(
        self,
        x_hat: jax.Array,
        probabilities: Sequence[jax.Array],
        x: jax.Array,
    ) -> RateDistortionLoss:
        if x.ndim != 4:
            raise ValueError("RateMSEDistortionLoss only defined for 4D inputs.")
        factor = -math.log(2) * x.shape[0] * x.shape[2] * x.shape[3]

        sse, log_sum = _fused_partial_sums(x_hat, x, tuple(probabilities),
                                           self.block_rows)

        rate = log_sum / factor
        distortion = sse / float(x.size)
        rate_distortion = self.trade_off * self.maximum ** 2 * distortion + rate
        # NOTE: matches the original module, which returns the tuple positionally
        # as (rate, distortion, rate_distortion) despite the NamedTuple field names.
        return RateDistortionLoss(rate, distortion, rate_distortion)


# ------------------------------------ main ----------------------------------------

def _reference(x_hat, probabilities, x, trade_off=0.01, maximum=255):
    factor = -math.log(2) * x.shape[0] * x.shape[2] * x.shape[3]
    rate = jnp.stack([jnp.log(p).sum() for p in probabilities]).sum() / factor
    dist = jnp.mean((x_hat.astype(jnp.float32) - x.astype(jnp.float32)) ** 2)
    return rate, dist, trade_off * maximum ** 2 * dist + rate


def _check(out, ref, rtol, atol):
    for got, want in zip(out, ref):
        assert jnp.allclose(got, want, rtol=rtol, atol=atol), (got, want)


if __name__ == "__main__":
    key = jax.random.PRNGKey(0)
    k = jax.random.split(key, 12)

    # Scenario 1: small NCHW shapes, single block per tensor (incl. block > array).
    x = jax.random.uniform(k[0], (2, 4, 16, 16), dtype=jnp.float32) * 255.0
    x_hat = x + jax.random.normal(k[1], (2, 4, 16, 16), dtype=jnp.float32)
    p0 = jax.random.uniform(k[2], (2, 8, 8, 8), jnp.float32, minval=1e-3, maxval=1.0)
    p1 = jax.random.uniform(k[3], (2, 4, 4, 4), jnp.float32, minval=1e-3, maxval=1.0)
    probs = (p0, p1)

    loss_fn = RateMSEDistortionLossPallas(trade_off=0.01, maximum=255)
    out = jax.block_until_ready(loss_fn(x_hat, probs, x))
    _check(out, _reference(x_hat, probs, x), 1e-5, 1e-5)

    # Scenario 2: multi-block grid with masked partial tail blocks, a tensor whose
    # numel is not a multiple of 128 (pad path), and a ragged (non-multiple-of-8)
    # row count handled purely by in-kernel masking.
    x = jax.random.uniform(k[4], (2, 3, 16, 32), dtype=jnp.float32) * 255.0
    x_hat = x + jax.random.normal(k[5], (2, 3, 16, 32), dtype=jnp.float32)
    p0 = jax.random.uniform(k[6], (3, 4, 16, 16), jnp.float32, minval=1e-3, maxval=1.0)
    p1 = jax.random.uniform(k[7], (2, 5, 7, 3), jnp.float32, minval=1e-3, maxval=1.0)
    p2 = jax.random.uniform(k[8], (2, 3, 20, 16), jnp.float32, minval=1e-3, maxval=1.0)
    probs = (p0, p1, p2)

    loss_fn = RateMSEDistortionLossPallas(trade_off=0.01, maximum=255, block_rows=16)
    out = jax.block_until_ready(loss_fn(x_hat, probs, x))
    _check(out, _reference(x_hat, probs, x), 1e-5, 1e-5)

    # Scenario 3: moderate size so blocks exceed the 1024-row compute chunk
    # (exercises the in-kernel fori_loop chunking + remainder + masked tail).
    x = jax.random.uniform(k[9], (2, 7, 128, 130), dtype=jnp.float32) * 255.0
    x_hat = x + jax.random.normal(k[10], (2, 7, 128, 130), dtype=jnp.float32)
    p0 = jax.random.uniform(k[11], (2, 8, 96, 100), jnp.float32, minval=1e-3, maxval=1.0)
    p1 = jax.random.uniform(k[3], (2, 4, 4, 4), jnp.float32, minval=1e-3, maxval=1.0)
    probs = (p0, p1)

    loss_fn = RateMSEDistortionLossPallas(trade_off=0.01, maximum=255)
    out = jax.block_until_ready(loss_fn(x_hat, probs, x))
    _check(out, _reference(x_hat, probs, x), 1e-4, 1e-4)

    print("KERNEL_OK")
</pallas_src>

<mosaic_0001>
module attributes {stable_mosaic.version = 11 : i64} {
  func.func @kernel(%arg0: i32, %arg1: i32, %arg2: memref<2x3xi32, #tpu.memory_space<smem>>, %arg3: memref<2x3xi32, #tpu.memory_space<smem>>, %arg4: memref<2x3xi32, #tpu.memory_space<smem>>, %arg5: memref<2x3xi32, #tpu.memory_space<smem>>, %arg6: memref<16x128xf32, #tpu.memory_space<vmem>>, %arg7: memref<16x128xf32, #tpu.memory_space<vmem>>, %arg8: memref<8x128xf32, #tpu.memory_space<vmem>>, %arg9: memref<8x128xf32, #tpu.memory_space<vmem>>, %arg10: memref<1x8x128xf32, #tpu.memory_space<vmem>>, %arg11: memref<1x8x128xf32, #tpu.memory_space<vmem>>) attributes {dimension_semantics = [#tpu.dimension_semantics<parallel>, #tpu.dimension_semantics<arbitrary>], iteration_bounds = array<i64: 2, 3>, scalar_prefetch = 4 : i64, scratch_operands = 0 : i64, tpu.core_type = #tpu.core_type<tc>, window_params = [{transform_indices = @transform_0, window_bounds = array<i64: 16, 128>}, {transform_indices = @transform_1, window_bounds = array<i64: 16, 128>}, {transform_indices = @transform_2, window_bounds = array<i64: 8, 128>}, {transform_indices = @transform_3, window_bounds = array<i64: 8, 128>}, {transform_indices = @transform_4, window_bounds = array<i64: 1, 8, 128>}, {transform_indices = @transform_5, window_bounds = array<i64: 1, 8, 128>}]} {
    %c0_i32 = arith.constant 0 : i32
    %0 = arith.cmpi eq, %arg1, %c0_i32 : i32
    %1 = arith.extui %0 : i1 to i32
    %c0_i32_0 = arith.constant 0 : i32
    %2 = arith.cmpi ne, %1, %c0_i32_0 : i32
    scf.if %2 {
      %cst = arith.constant 0.000000e+00 : f32
      %20 = vector.broadcast %cst : f32 to vector<8x128xf32>
      %c0 = arith.constant 0 : index
      %c0_6 = arith.constant 0 : index
      %c0_7 = arith.constant 0 : index
      %21 = vector.load %arg10[%c0, %c0_6, %c0_7] : memref<1x8x128xf32, #tpu.memory_space<vmem>>, vector<1x8x128xf32>
      %22 = vector.shape_cast %21 : vector<1x8x128xf32> to vector<8x128xf32>
      %23 = vector.shape_cast %20 : vector<8x128xf32> to vector<1x8x128xf32>
      tpu.vector_store %arg10[%c0, %c0_6, %c0_7], %23 {strides = array<i32>} : memref<1x8x128xf32, #tpu.memory_space<vmem>>, vector<1x8x128xf32>,
      %cst_8 = arith.constant 0.000000e+00 : f32
      %24 = vector.broadcast %cst_8 : f32 to vector<8x128xf32>
      %c0_9 = arith.constant 0 : index
      %c0_10 = arith.constant 0 : index
      %c0_11 = arith.constant 0 : index
      %25 = vector.load %arg11[%c0_9, %c0_10, %c0_11] : memref<1x8x128xf32, #tpu.memory_space<vmem>>, vector<1x8x128xf32>
      %26 = vector.shape_cast %25 : vector<1x8x128xf32> to vector<8x128xf32>
      %27 = vector.shape_cast %24 : vector<8x128xf32> to vector<1x8x128xf32>
      tpu.vector_store %arg11[%c0_9, %c0_10, %c0_11], %27 {strides = array<i32>} : memref<1x8x128xf32, #tpu.memory_space<vmem>>, vector<1x8x128xf32>,
    } else {
    }
    %3 = arith.index_cast %arg0 : i32 to index
    %4 = arith.index_cast %arg1 : i32 to index
    %5 = memref.load %arg2[%3, %4] : memref<2x3xi32, #tpu.memory_space<smem>>
    %c0_i32_1 = arith.constant 0 : i32
    %6 = arith.cmpi eq, %5, %c0_i32_1 : i32
    %7 = arith.extui %6 : i1 to i32
    %c0_i32_2 = arith.constant 0 : i32
    %8 = arith.cmpi ne, %7, %c0_i32_2 : i32
    scf.if %8 {
      %c0 = arith.constant 0 : index
      %c0_6 = arith.constant 0 : index
      %c0_7 = arith.constant 0 : index
      %20 = vector.load %arg10[%c0, %c0_6, %c0_7] : memref<1x8x128xf32, #tpu.memory_space<vmem>>, vector<1x8x128xf32>
      %21 = vector.shape_cast %20 : vector<1x8x128xf32> to vector<8x128xf32>
      %c0_8 = arith.constant 0 : index
      %c0_9 = arith.constant 0 : index
      %22 = vector.load %arg6[%c0_8, %c0_9] : memref<16x128xf32, #tpu.memory_space<vmem>>, vector<16x128xf32>
      %c0_10 = arith.constant 0 : index
      %c0_11 = arith.constant 0 : index
      %23 = vector.load %arg7[%c0_10, %c0_11] : memref<16x128xf32, #tpu.memory_space<vmem>>, vector<16x128xf32>
      %24 = arith.subf %22, %23 : vector<16x128xf32>
      %25 = arith.mulf %24, %24 : vector<16x128xf32>
      %26 = vector.shape_cast %25 : vector<16x128xf32> to vector<2x8x128xf32>
      %cst = arith.constant dense<0.000000e+00> : vector<8x128xf32>
      %27 = vector.multi_reduction <add>, %26, %cst [0] : vector<2x8x128xf32> to vector<8x128xf32>
      %28 = arith.addf %21, %27 : vector<8x128xf32>
      %c0_12 = arith.constant 0 : index
      %c0_13 = arith.constant 0 : index
      %c0_14 = arith.constant 0 : index
      %29 = vector.load %arg10[%c0_12, %c0_13, %c0_14] : memref<1x8x128xf32, #tpu.memory_space<vmem>>, vector<1x8x128xf32>
      %30 = vector.shape_cast %29 : vector<1x8x128xf32> to vector<8x128xf32>
      %31 = vector.shape_cast %28 : vector<8x128xf32> to vector<1x8x128xf32>
      tpu.vector_store %arg10[%c0_12, %c0_13, %c0_14], %31 {strides = array<i32>} : memref<1x8x128xf32, #tpu.memory_space<vmem>>, vector<1x8x128xf32>,
    } else {
    }
    %c1_i32 = arith.constant 1 : i32
    %9 = arith.cmpi eq, %5, %c1_i32 : i32
    %10 = arith.extui %9 : i1 to i32
    %c0_i32_3 = arith.constant 0 : i32
    %11 = arith.cmpi ne, %10, %c0_i32_3 : i32
    scf.if %11 {
      %c0 = arith.constant 0 : index
      %c0_6 = arith.constant 0 : index
      %c0_7 = arith.constant 0 : index
      %20 = vector.load %arg11[%c0, %c0_6, %c0_7] : memref<1x8x128xf32, #tpu.memory_space<vmem>>, vector<1x8x128xf32>
      %21 = vector.shape_cast %20 : vector<1x8x128xf32> to vector<8x128xf32>
      %c0_8 = arith.constant 0 : index
      %c0_9 = arith.constant 0 : index
      %22 = vector.load %arg8[%c0_8, %c0_9] : memref<8x128xf32, #tpu.memory_space<vmem>>, vector<8x128xf32>
      %23 = math.log %22 : vector<8x128xf32>
      %24 = vector.shape_cast %23 : vector<8x128xf32> to vector<1x8x128xf32>
      %cst = arith.constant dense<0.000000e+00> : vector<8x128xf32>
      %25 = vector.multi_reduction <add>, %24, %cst [0] : vector<1x8x128xf32> to vector<8x128xf32>
      %26 = arith.addf %21, %25 : vector<8x128xf32>
      %c0_10 = arith.constant 0 : index
      %c0_11 = arith.constant 0 : index
      %c0_12 = arith.constant 0 : index
      %27 = vector.load %arg11[%c0_10, %c0_11, %c0_12] : memref<1x8x128xf32, #tpu.memory_space<vmem>>, vector<1x8x128xf32>
      %28 = vector.shape_cast %27 : vector<1x8x128xf32> to vector<8x128xf32>
      %29 = vector.shape_cast %26 : vector<8x128xf32> to vector<1x8x128xf32>
      tpu.vector_store %arg11[%c0_10, %c0_11, %c0_12], %29 {strides = array<i32>} : memref<1x8x128xf32, #tpu.memory_space<vmem>>, vector<1x8x128xf32>,
    } else {
    }
    %12 = arith.index_cast %arg0 : i32 to index
    %13 = arith.index_cast %arg1 : i32 to index
    %14 = memref.load %arg5[%12, %13] : memref<2x3xi32, #tpu.memory_space<smem>>
    %c2_i32 = arith.constant 2 : i32
    %15 = arith.cmpi eq, %5, %c2_i32 : i32
    %c0_i32_4 = arith.constant 0 : i32
    %16 = arith.cmpi eq, %14, %c0_i32_4 : i32
    %17 = arith.andi %15, %16 : i1
    %18 = arith.extui %17 : i1 to i32
    %c0_i32_5 = arith.constant 0 : i32
    %19 = arith.cmpi ne, %18, %c0_i32_5 : i32
    scf.if %19 {
      %c0 = arith.constant 0 : index
      %c0_6 = arith.constant 0 : index
      %c0_7 = arith.constant 0 : index
      %20 = vector.load %arg11[%c0, %c0_6, %c0_7] : memref<1x8x128xf32, #tpu.memory_space<vmem>>, vector<1x8x128xf32>
      %21 = vector.shape_cast %20 : vector<1x8x128xf32> to vector<8x128xf32>
      %c0_8 = arith.constant 0 : index
      %c0_9 = arith.constant 0 : index
      %22 = vector.load %arg9[%c0_8, %c0_9] : memref<8x128xf32, #tpu.memory_space<vmem>>, vector<8x128xf32>
      %23 = tpu.iota {dimensions = array<i32: 0>} : vector<8x128xi32>
      %c8_i32 = arith.constant 8 : i32
      %24 = arith.muli %14, %c8_i32 : i32
      %25 = vector.broadcast %24 : i32 to vector<8x128xi32>
      %26 = arith.addi %23, %25 : vector<8x128xi32>
      %c0_i32_10 = arith.constant 0 : i32
      %27 = vector.broadcast %c0_i32_10 : i32 to vector<8x128xi32>
      %28 = arith.addi %26, %27 : vector<8x128xi32>
      %c1_i32_11 = arith.constant 1 : i32
      %29 = vector.broadcast %c1_i32_11 : i32 to vector<8x128xi32>
      %30 = arith.cmpi slt, %28, %29 : vector<8x128xi32>
      %cst = arith.constant 1.000000e+00 : f32
      %31 = vector.broadcast %cst : f32 to vector<8x128xf32>
      %32 = arith.select %30, %22, %31 : vector<8x128xi1>, vector<8x128xf32>
      %33 = math.log %32 : vector<8x128xf32>
      %34 = vector.shape_cast %33 : vector<8x128xf32> to vector<1x8x128xf32>
      %cst_12 = arith.constant dense<0.000000e+00> : vector<8x128xf32>
      %35 = vector.multi_reduction <add>, %34, %cst_12 [0] : vector<1x8x128xf32> to vector<8x128xf32>
      %36 = arith.addf %21, %35 : vector<8x128xf32>
      %c0_13 = arith.constant 0 : index
      %c0_14 = arith.constant 0 : index
      %c0_15 = arith.constant 0 : index
      %37 = vector.load %arg11[%c0_13, %c0_14, %c0_15] : memref<1x8x128xf32, #tpu.memory_space<vmem>>, vector<1x8x128xf32>
      %38 = vector.shape_cast %37 : vector<1x8x128xf32> to vector<8x128xf32>
      %39 = vector.shape_cast %36 : vector<8x128xf32> to vector<1x8x128xf32>
      tpu.vector_store %arg11[%c0_13, %c0_14, %c0_15], %39 {strides = array<i32>} : memref<1x8x128xf32, #tpu.memory_space<vmem>>, vector<1x8x128xf32>,
    } else {
    }
    return
  }
  func.func @transform_0(%arg0: i32, %arg1: i32, %arg2: memref<2x3xi32, #tpu.memory_space<smem>>, %arg3: memref<2x3xi32, #tpu.memory_space<smem>>, %arg4: memref<2x3xi32, #tpu.memory_space<smem>>, %arg5: memref<2x3xi32, #tpu.memory_space<smem>>) -> (i32, i32) {
    %0 = arith.index_cast %arg0 : i32 to index
    %1 = arith.index_cast %arg1 : i32 to index
    %2 = memref.load %arg3[%0, %1] : memref<2x3xi32, #tpu.memory_space<smem>>
    %c0_i32 = arith.constant 0 : i32
    %c0_i32_0 = arith.constant 0 : i32
    return %2, %c0_i32 : i32, i32
  }
  func.func @transform_1(%arg0: i32, %arg1: i32, %arg2: memref<2x3xi32, #tpu.memory_space<smem>>, %arg3: memref<2x3xi32, #tpu.memory_space<smem>>, %arg4: memref<2x3xi32, #tpu.memory_space<smem>>, %arg5: memref<2x3xi32, #tpu.memory_space<smem>>) -> (i32, i32) {
    %0 = arith.index_cast %arg0 : i32 to index
    %1 = arith.index_cast %arg1 : i32 to index
    %2 = memref.load %arg3[%0, %1] : memref<2x3xi32, #tpu.memory_space<smem>>
    %c0_i32 = arith.constant 0 : i32
    %c0_i32_0 = arith.constant 0 : i32
    return %2, %c0_i32 : i32, i32
  }
  func.func @transform_2(%arg0: i32, %arg1: i32, %arg2: memref<2x3xi32, #tpu.memory_space<smem>>, %arg3: memref<2x3xi32, #tpu.memory_space<smem>>, %arg4: memref<2x3xi32, #tpu.memory_space<smem>>, %arg5: memref<2x3xi32, #tpu.memory_space<smem>>) -> (i32, i32) {
    %0 = arith.index_cast %arg0 : i32 to index
    %1 = arith.index_cast %arg1 : i32 to index
    %2 = memref.load %arg4[%0, %1] : memref<2x3xi32, #tpu.memory_space<smem>>
    %c0_i32 = arith.constant 0 : i32
    %c0_i32_0 = arith.constant 0 : i32
    return %2, %c0_i32 : i32, i32
  }
  func.func @transform_3(%arg0: i32, %arg1: i32, %arg2: memref<2x3xi32, #tpu.memory_space<smem>>, %arg3: memref<2x3xi32, #tpu.memory_space<smem>>, %arg4: memref<2x3xi32, #tpu.memory_space<smem>>, %arg5: memref<2x3xi32, #tpu.memory_space<smem>>) -> (i32, i32) {
    %0 = arith.index_cast %arg0 : i32 to index
    %1 = arith.index_cast %arg1 : i32 to index
    %2 = memref.load %arg5[%0, %1] : memref<2x3xi32, #tpu.memory_space<smem>>
    %c0_i32 = arith.constant 0 : i32
    %c0_i32_0 = arith.constant 0 : i32
    return %2, %c0_i32 : i32, i32
  }
  func.func @transform_4(%arg0: i32, %arg1: i32, %arg2: memref<2x3xi32, #tpu.memory_space<smem>>, %arg3: memref<2x3xi32, #tpu.memory_space<smem>>, %arg4: memref<2x3xi32, #tpu.memory_space<smem>>, %arg5: memref<2x3xi32, #tpu.memory_space<smem>>) -> (i32, i32, i32) {
    %c0_i32 = arith.constant 0 : i32
    %c0_i32_0 = arith.constant 0 : i32
    %c0_i32_1 = arith.constant 0 : i32
    return %arg0, %c0_i32, %c0_i32_0 : i32, i32, i32
  }
  func.func @transform_5(%arg0: i32, %arg1: i32, %arg2: memref<2x3xi32, #tpu.memory_space<smem>>, %arg3: memref<2x3xi32, #tpu.memory_space<smem>>, %arg4: memref<2x3xi32, #tpu.memory_space<smem>>, %arg5: memref<2x3xi32, #tpu.memory_space<smem>>) -> (i32, i32, i32) {
    %c0_i32 = arith.constant 0 : i32
    %c0_i32_0 = arith.constant 0 : i32
    %c0_i32_1 = arith.constant 0 : i32
    return %arg0, %c0_i32, %c0_i32_0 : i32, i32, i32
  }
}

</mosaic_0001>

<llo_original>
// kernel: tpu_custom_call.1
$region0: #{tpu_custom_call.1}
  #allocation0 [shape = 'u32[]', space=smem, size = 0x4, offset = 0x4, fixed_abs, tag = 'smem constant byte address 0x4 - core index']
  #allocation1 [shape = 'u32[144,128]{1,0:T(1,128)}', space=vmem, size = 0x12000, scoped, tag = 'internal scratch']
  #allocation2 [shape = 's32[1]{0}', space=sflag, size = 0x4, scoped, tag = 'scoped memory for tpu_custom_call.1']
  #allocation3 [shape = 'u8[1024]{0}', space=smem, size = 0x400, scoped, tag = 'prefetched SMEM operand 0']
  #allocation4 [shape = 'u8[1024]{0}', space=smem, size = 0x400, scoped, tag = 'prefetched SMEM operand 1']
  #allocation5 [shape = 'u8[1024]{0}', space=smem, size = 0x400, scoped, tag = 'prefetched SMEM operand 2']
  #allocation6 [shape = 'u8[1024]{0}', space=smem, size = 0x400, scoped, tag = 'prefetched SMEM operand 3']
  %s0 = inlined_call_operand.hbm [shape: s32[2,3], index: 0, kind: input, shape index: {}]
  %s1 = inlined_call_operand.hbm [shape: s32[2,3], index: 1, kind: input, shape index: {}]
  %s2 = inlined_call_operand.vmem [shape: s32[2,3], index: 2, kind: input, shape index: {}]
  %s3 = inlined_call_operand.hbm [shape: s32[2,3], index: 3, kind: input, shape index: {}]
  %s4 = inlined_call_operand.hbm [shape: f32[16,128], index: 4, kind: input, shape index: {}]
  %s5 = inlined_call_operand.hbm [shape: f32[16,128], index: 5, kind: input, shape index: {}]
  %s6 = inlined_call_operand.vmem [shape: f32[8,128], index: 6, kind: input, shape index: {}]
  %s7 = inlined_call_operand.vmem [shape: f32[1,128], index: 7, kind: input, shape index: {}]
  %s8 = inlined_call_operand.hbm [shape: f32[2,8,128], index: 8, kind: output, shape index: {0}]
  %s9 = inlined_call_operand.hbm [shape: f32[2,8,128], index: 9, kind: output, shape index: {1}]
  %10 = xla_tuple %s8, %s9
  %s11 = sld [smem:[#allocation0]]
  $region81: #{tpu_custom_call.1} parent=0
    _
  %s13 = ssub.s32 1, %s11
  %s14 = scalar_select 0, %s13, %s11
  %16 = dma.hbm_to_smem %s0, 32, [#allocation3], [#allocation2]
  %18 = dma.hbm_to_smem %s1, 32, [#allocation4], [#allocation2]
  %s19 = sshll.u32 %s2, 4
  %s20 = int_to_ptr.vmem [resolvable:$true] %s19
  %22 = dma.vmem_to_smem %s20, 32, [#allocation5], [#allocation2]
  %24 = dma.hbm_to_smem %s3, 32, [#allocation6], [#allocation2]
  %25 = dma.done [#allocation2], 128
  %26 = sfence
  $region1: #{tpu_custom_call.1} parent=0
    #allocation7 [shape = 'u8[16384]{0}', space=vmem, size = 0x4000, scoped, tag = 'input window, operand 4']
    #allocation8 [shape = 's32[2]{0}', space=sflag, size = 0x8, scoped, tag = 'scoped memory for tpu_custom_call.1']
    #allocation9 [shape = 's32[2]{0}', space=sflag, size = 0x8, scoped, tag = 'scoped memory for tpu_custom_call.1']
    #allocation10 [shape = 'u8[16384]{0}', space=vmem, size = 0x4000, scoped, tag = 'input window, operand 5']
    #allocation11 [shape = 's32[2]{0}', space=sflag, size = 0x8, scoped, tag = 'scoped memory for tpu_custom_call.1']
    #allocation12 [shape = 'u8[8192]{0}', space=vmem, size = 0x2000, scoped, tag = 'output window, operand 0']
    #allocation13 [shape = 'u8[8192]{0}', space=vmem, size = 0x2000, scoped, tag = 'output window, operand 1']
    #allocation14 [shape = 's32[2]{0}', space=sflag, size = 0x8, scoped, tag = 'scoped memory for tpu_custom_call.1']
    %27 = vsyncpa [#allocation8], 0
    %s28 = scalar_lea.sflag [#allocation8], 1
    %29 = vsyncpa %s28, 0
    %30 = vsyncpa [#allocation11], 0
    %s31 = scalar_lea.sflag [#allocation11], 1
    %32 = vsyncpa %s31, 0
    %33 = vsyncpa [#allocation9], 0
    %s34 = scalar_lea.sflag [#allocation9], 1
    %35 = vsyncpa %s34, 0
    %36 = vsyncpa [#allocation14], 0
    %s37 = scalar_lea.sflag [#allocation14], 1
    %38 = vsyncpa %s37, 0
    loop: start=0, step=1, limit=8
    $region2: #{tpu_custom_call.1} parent=1 // loop_pre_header
      _
    $region3: #{tpu_custom_call.1} parent=1 // loop_header
      %s40 = sphi 0, %s44
      %p41 = scmp.ge.s32.totalorder %s40, 8
      %s47 = sphi 0, %s59
      %s48 = sphi 0, %s55
      %s49 = sphi 0, %s47
      %s50 = sphi 0, %s48
      %s51 = sphi 0, %s49
      %s52 = sphi 0, %s50
      %s78 = sphi 0, %s80
      %s81 = sphi 0, %s78
      %s82 = sphi 0, %s81
      %s98 = sphi 0, %s82
      %s120 = sphi 0, %s122
      %s123 = sphi 0, %s120
      %s124 = sphi 0, %s123
      %s140 = sphi 0, %s124
      %s162 = sphi 0, %s164
      %s165 = sphi 0, %s162
      %s166 = sphi 0, %s165
      %s182 = sphi 0, %s166
      %s204 = sphi 0, %s206
      %s207 = sphi 0, %s204
      %s208 = sphi 0, %s207
      %s224 = sphi 0, %s208
      %s230 = sphi 0, %s232
      %s233 = sphi 0, %s230
      %s234 = sphi 0, %s233
      %s250 = sphi 0, %s234
      %s256 = sphi 0, %s258
      %s259 = sphi 0, %s256
      %s260 = sphi 0, %s259
      %s276 = sphi 0, %s260
    $region4: #{tpu_custom_call.1} parent=1 // loop_header_branch
      %43 = sbr.rel (%p41) target = $region8
    $region5: #{tpu_custom_call.1} parent=1 // loop_body
      %s45 = ssub.s32 %s40, 1
      %s46 = ssub.s32 %s40, 2
      %s53 = sadd.s32 1, %s48
      %p54 = scmp.ge.s32.totalorder %s53, 3
      %s55 = scalar_select %p54, 0, %s53
      %s56 = sadd.s32 1, %s47
      %s57 = scalar_select %p54, %s56, %s47
      %p58 = scmp.ge.s32.totalorder %s57, 2
      %s59 = scalar_select %p58, 0, %s57
      %s60 = sshra.s32 %s48, 7
      %s61 = sand.u32 %s48, 127
      %s62 = sadd.s32 %s60, %s47
      %s63 = smul.u32 %s62, 128
      %s64 = sshra.s32 %s48, 7
      %s65 = sand.u32 %s48, 127
      %s66 = sadd.s32 %s63, %s65
      %s67 = sld [smem:[#allocation4 + %s66]]
      %s68 = sshra.s32 %s55, 7
      %s69 = sand.u32 %s55, 127
      %s70 = sadd.s32 %s68, %s59
      %s71 = smul.u32 %s70, 128
      %s72 = sshra.s32 %s55, 7
      %s73 = sand.u32 %s55, 127
      %s74 = sadd.s32 %s71, %s73
      %s75 = sld [smem:[#allocation4 + %s74]]
      %s76 = ssub.s32 %s67, %s75
      %p77 = scmp.eq.s32.totalorder %s76, 0
      %s79 = sadd.s32 %s78, 1
      %s80 = scalar_select %p77, %s78, %s79
      %p83 = pneg %p77
      %p84 = scmp.eq.s32.totalorder %s40, 5
      %p85 = por %p83, %p84
      %p86 = scmp.ne.s32.totalorder %s78, %s81
      %p87 = scmp.eq.s32.totalorder %s40, 0
      %p88 = por %p86, %p87
      %p89 = scmp.ne.s32.totalorder %s78, %s81
      %p90 = scmp.eq.s32.totalorder %s45, 5
      %p91 = por %p89, %p90
      %p92 = scmp.ne.s32.totalorder %s81, %s82
      %p93 = scmp.eq.s32.totalorder %s45, 0
      %p94 = por %p92, %p93
      %p95 = scmp.ne.s32.totalorder %s81, %s82
      %p96 = scmp.eq.s32.totalorder %s46, 5
      %p97 = por %p95, %p96
      %p99 = scmp.ne.s32.totalorder %s82, %s98
      %p100 = scmp.eq.s32.totalorder %s46, 0
      %p101 = por %p99, %p100
      %s102 = sshra.s32 %s48, 7
      %s103 = sand.u32 %s48, 127
      %s104 = sadd.s32 %s102, %s47
      %s105 = smul.u32 %s104, 128
      %s106 = sshra.s32 %s48, 7
      %s107 = sand.u32 %s48, 127
      %s108 = sadd.s32 %s105, %s107
      %s109 = sld [smem:[#allocation4 + %s108]]
      %s110 = sshra.s32 %s55, 7
      %s111 = sand.u32 %s55, 127
      %s112 = sadd.s32 %s110, %s59
      %s113 = smul.u32 %s112, 128
      %s114 = sshra.s32 %s55, 7
      %s115 = sand.u32 %s55, 127
      %s116 = sadd.s32 %s113, %s115
      %s117 = sld [smem:[#allocation4 + %s116]]
      %s118 = ssub.s32 %s109, %s117
      %p119 = scmp.eq.s32.totalorder %s118, 0
      %s121 = sadd.s32 %s120, 1
      %s122 = scalar_select %p119, %s120, %s121
      %p125 = pneg %p119
      %p126 = scmp.eq.s32.totalorder %s40, 5
      %p127 = por %p125, %p126
      %p128 = scmp.ne.s32.totalorder %s120, %s123
      %p129 = scmp.eq.s32.totalorder %s40, 0
      %p130 = por %p128, %p129
      %p131 = scmp.ne.s32.totalorder %s120, %s123
      %p132 = scmp.eq.s32.totalorder %s45, 5
      %p133 = por %p131, %p132
      %p134 = scmp.ne.s32.totalorder %s123, %s124
      %p135 = scmp.eq.s32.totalorder %s45, 0
      %p136 = por %p134, %p135
      %p137 = scmp.ne.s32.totalorder %s123, %s124
      %p138 = scmp.eq.s32.totalorder %s46, 5
      %p139 = por %p137, %p138
      %p141 = scmp.ne.s32.totalorder %s124, %s140
      %p142 = scmp.eq.s32.totalorder %s46, 0
      %p143 = por %p141, %p142
      %s144 = sshra.s32 %s48, 7
      %s145 = sand.u32 %s48, 127
      %s146 = sadd.s32 %s144, %s47
      %s147 = smul.u32 %s146, 128
      %s148 = sshra.s32 %s48, 7
      %s149 = sand.u32 %s48, 127
      %s150 = sadd.s32 %s147, %s149
      %s151 = sld [smem:[#allocation5 + %s150]]
      %s152 = sshra.s32 %s55, 7
      %s153 = sand.u32 %s55, 127
      %s154 = sadd.s32 %s152, %s59
      %s155 = smul.u32 %s154, 128
      %s156 = sshra.s32 %s55, 7
      %s157 = sand.u32 %s55, 127
      %s158 = sadd.s32 %s155, %s157
      %s159 = sld [smem:[#allocation5 + %s158]]
      %s160 = ssub.s32 %s151, %s159
      %p161 = scmp.eq.s32.totalorder %s160, 0
      %s163 = sadd.s32 %s162, 1
      %s164 = scalar_select %p161, %s162, %s163
      %p167 = pneg %p161
      %p168 = scmp.eq.s32.totalorder %s40, 5
      %p169 = por %p167, %p168
      %p170 = scmp.ne.s32.totalorder %s162, %s165
      %p171 = scmp.eq.s32.totalorder %s40, 0
      %p172 = por %p170, %p171
      %p173 = scmp.ne.s32.totalorder %s162, %s165
      %p174 = scmp.eq.s32.totalorder %s45, 5
      %p175 = por %p173, %p174
      %p176 = scmp.ne.s32.totalorder %s165, %s166
      %p177 = scmp.eq.s32.totalorder %s45, 0
      %p178 = por %p176, %p177
      %p179 = scmp.ne.s32.totalorder %s165, %s166
      %p180 = scmp.eq.s32.totalorder %s46, 5
      %p181 = por %p179, %p180
      %p183 = scmp.ne.s32.totalorder %s166, %s182
      %p184 = scmp.eq.s32.totalorder %s46, 0
      %p185 = por %p183, %p184
      %s186 = sshra.s32 %s48, 7
      %s187 = sand.u32 %s48, 127
      %s188 = sadd.s32 %s186, %s47
      %s189 = smul.u32 %s188, 128
      %s190 = sshra.s32 %s48, 7
      %s191 = sand.u32 %s48, 127
      %s192 = sadd.s32 %s189, %s191
      %s193 = sld [smem:[#allocation6 + %s192]]
      %s194 = sshra.s32 %s55, 7
      %s195 = sand.u32 %s55, 127
      %s196 = sadd.s32 %s194, %s59
      %s197 = smul.u32 %s196, 128
      %s198 = sshra.s32 %s55, 7
      %s199 = sand.u32 %s55, 127
      %s200 = sadd.s32 %s197, %s199
      %s201 = sld [smem:[#allocation6 + %s200]]
      %s202 = ssub.s32 %s193, %s201
      %p203 = scmp.eq.s32.totalorder %s202, 0
      %s205 = sadd.s32 %s204, 1
      %s206 = scalar_select %p203, %s204, %s205
      %p209 = pneg %p203
      %p210 = scmp.eq.s32.totalorder %s40, 5
      %p211 = por %p209, %p210
      %p212 = scmp.ne.s32.totalorder %s204, %s207
      %p213 = scmp.eq.s32.totalorder %s40, 0
      %p214 = por %p212, %p213
      %p215 = scmp.ne.s32.totalorder %s204, %s207
      %p216 = scmp.eq.s32.totalorder %s45, 5
      %p217 = por %p215, %p216
      %p218 = scmp.ne.s32.totalorder %s207, %s208
      %p219 = scmp.eq.s32.totalorder %s45, 0
      %p220 = por %p218, %p219
      %p221 = scmp.ne.s32.totalorder %s207, %s208
      %p222 = scmp.eq.s32.totalorder %s46, 5
      %p223 = por %p221, %p222
      %p225 = scmp.ne.s32.totalorder %s208, %s224
      %p226 = scmp.eq.s32.totalorder %s46, 0
      %p227 = por %p225, %p226
      %s228 = ssub.s32 %s47, %s59
      %p229 = scmp.eq.s32.totalorder %s228, 0
      %s231 = sadd.s32 %s230, 1
      %s232 = scalar_select %p229, %s230, %s231
      %p235 = pneg %p229
      %p236 = scmp.eq.s32.totalorder %s40, 5
      %p237 = por %p235, %p236
      %p238 = scmp.ne.s32.totalorder %s230, %s233
      %p239 = scmp.eq.s32.totalorder %s40, 0
      %p240 = por %p238, %p239
      %p241 = scmp.ne.s32.totalorder %s230, %s233
      %p242 = scmp.eq.s32.totalorder %s45, 5
      %p243 = por %p241, %p242
      %p244 = scmp.ne.s32.totalorder %s233, %s234
      %p245 = scmp.eq.s32.totalorder %s45, 0
      %p246 = por %p244, %p245
      %p247 = scmp.ne.s32.totalorder %s233, %s234
      %p248 = scmp.eq.s32.totalorder %s46, 5
      %p249 = por %p247, %p248
      %p251 = scmp.ne.s32.totalorder %s234, %s250
      %p252 = scmp.eq.s32.totalorder %s46, 0
      %p253 = por %p251, %p252
      %s254 = ssub.s32 %s47, %s59
      %p255 = scmp.eq.s32.totalorder %s254, 0
      %s257 = sadd.s32 %s256, 1
      %s258 = scalar_select %p255, %s256, %s257
      %p261 = pneg %p255
      %p262 = scmp.eq.s32.totalorder %s40, 5
      %p263 = por %p261, %p262
      %p264 = scmp.ne.s32.totalorder %s256, %s259
      %p265 = scmp.eq.s32.totalorder %s40, 0
      %p266 = por %p264, %p265
      %p267 = scmp.ne.s32.totalorder %s256, %s259
      %p268 = scmp.eq.s32.totalorder %s45, 5
      %p269 = por %p267, %p268
      %p270 = scmp.ne.s32.totalorder %s259, %s260
      %p271 = scmp.eq.s32.totalorder %s45, 0
      %p272 = por %p270, %p271
      %p273 = scmp.ne.s32.totalorder %s259, %s260
      %p274 = scmp.eq.s32.totalorder %s46, 5
      %p275 = por %p273, %p274
      %p277 = scmp.ne.s32.totalorder %s260, %s276
      %p278 = scmp.eq.s32.totalorder %s46, 0
      %p279 = por %p277, %p278
      %p280 = scmp.le.s32.totalorder 1, %s40
      %p281 = scmp.lt.s32.totalorder %s40, 7
      %p282 = pnand %p280, %p281
      %p283 = pneg %p282
      // Predicated region
      $region9: #{tpu_custom_call.1} parent=5 // pred_check
        _
      $region10: #{tpu_custom_call.1} parent=5 // pred_check_branch
        %285 = sbr.rel (%p282) target = $region12
      $region11: #{tpu_custom_call.1} parent=5 // pred_region
        %s286 = ssub.s32 %s40, 1
      $region12: #{tpu_custom_call.1} parent=5 // pred_fallthru
        _
      %p287 = scmp.lt.s32.totalorder %s40, 6
      // Predicated region
      $region13: #{tpu_custom_call.1} parent=5 // pred_check
        %p288 = pneg %p287
      $region14: #{tpu_custom_call.1} parent=5 // pred_check_branch
        %290 = sbr.rel (%p288) target = $region16
      $region15: #{tpu_custom_call.1} parent=5 // pred_region
        // Predicated region
        $region17: #{tpu_custom_call.1} parent=15 // pred_check
          %p291 = pneg %p88
        $region18: #{tpu_custom_call.1} parent=15 // pred_check_branch
          %293 = sbr.rel (%p291) target = $region20
        $region19: #{tpu_custom_call.1} parent=15 // pred_region
          %s294 = sand.u32 %s78, 1
          %s295 = scalar_lea.sflag [#allocation8], %s294
          %s296 = sand.u32 %s78, 1
          %s297 = smul.addr %s296, 16
          %s298 = scalar_lea.vmem [#allocation7], %s297
          %s299 = sshra.s32 %s48, 7
          %s300 = sand.u32 %s48, 127
          %s301 = sadd.s32 %s299, %s47
          %s302 = smul.u32 %s301, 128
          %s303 = sshra.s32 %s48, 7
          %s304 = sand.u32 %s48, 127
          %s305 = sadd.s32 %s302, %s304
          %s306 = sld [smem:[#allocation4 + %s305]]
          %s307 = smul.u32 2, %s306
          %s309 = ssub.s32 256, 256
          %310 = vsyncadd %s295, %s309
          %s311 = smul.addr %s307, 128
          %s312 = scalar_lea.hbm %s4, %s311
          %s313 = sshll.u32 %s298, 4
          %s314 = int_to_ptr.vmem [resolvable:$true] %s313
          %319 = dma.hbm_to_vmem [thread:$0]  %s312, 256, %s314, %s295, 128, 128, 8
        $region20: #{tpu_custom_call.1} parent=15 // pred_fallthru
          _
        // Predicated region
        $region21: #{tpu_custom_call.1} parent=15 // pred_check
          %p320 = pneg %p130
        $region22: #{tpu_custom_call.1} parent=15 // pred_check_branch
          %322 = sbr.rel (%p320) target = $region24
        $region23: #{tpu_custom_call.1} parent=15 // pred_region
          %s323 = sand.u32 %s120, 1
          %s324 = scalar_lea.sflag [#allocation11], %s323
          %s325 = sand.u32 %s120, 1
          %s326 = smul.addr %s325, 16
          %s327 = scalar_lea.vmem [#allocation10], %s326
          %s328 = sshra.s32 %s48, 7
          %s329 = sand.u32 %s48, 127
          %s330 = sadd.s32 %s328, %s47
          %s331 = smul.u32 %s330, 128
          %s332 = sshra.s32 %s48, 7
          %s333 = sand.u32 %s48, 127
          %s334 = sadd.s32 %s331, %s333
          %s335 = sld [smem:[#allocation4 + %s334]]
          %s336 = smul.u32 2, %s335
          %s338 = ssub.s32 256, 256
          %339 = vsyncadd %s324, %s338
          %s340 = smul.addr %s336, 128
          %s341 = scalar_lea.hbm %s5, %s340
          %s342 = sshll.u32 %s327, 4
          %s343 = int_to_ptr.vmem [resolvable:$true] %s342
          %348 = dma.hbm_to_vmem [thread:$0]  %s341, 256, %s343, %s324, 128, 128, 8
        $region24: #{tpu_custom_call.1} parent=15 // pred_fallthru
          _
        // Predicated region
        $region25: #{tpu_custom_call.1} parent=15 // pred_check
          %p349 = pneg %p172
        $region26: #{tpu_custom_call.1} parent=15 // pred_check_branch
          %351 = sbr.rel (%p349) target = $region28
        $region27: #{tpu_custom_call.1} parent=15 // pred_region
          %s352 = sshra.s32 %s48, 7
          %s353 = sand.u32 %s48, 127
          %s354 = sadd.s32 %s352, %s47
          %s355 = smul.u32 %s354, 128
          %s356 = sshra.s32 %s48, 7
          %s357 = sand.u32 %s48, 127
          %s358 = sadd.s32 %s355, %s357
          %s359 = sld [smem:[#allocation5 + %s358]]
          %p360 = scmp.lt.s32.totalorder %s359, 0
          %s361 = scalar_select %p360, %s359, 0
          %s362 = smul.addr %s361, 8
          %s363 = scalar_lea.vmem %s6, %s362
          %s364 = sshra.s32 %s48, 7
          %s365 = sand.u32 %s48, 127
          %s366 = sadd.s32 %s364, %s47
          %s367 = smul.u32 %s366, 128
          %s368 = sshra.s32 %s48, 7
          %s369 = sand.u32 %s48, 127
          %s370 = sadd.s32 %s367, %s369
          %s371 = sld [smem:[#allocation5 + %s370]]
        $region28: #{tpu_custom_call.1} parent=15 // pred_fallthru
          _
        // Predicated region
        $region29: #{tpu_custom_call.1} parent=15 // pred_check
          %p372 = pneg %p214
        $region30: #{tpu_custom_call.1} parent=15 // pred_check_branch
          %374 = sbr.rel (%p372) target = $region32
        $region31: #{tpu_custom_call.1} parent=15 // pred_region
          %s375 = sshra.s32 %s48, 7
          %s376 = sand.u32 %s48, 127
          %s377 = sadd.s32 %s375, %s47
          %s378 = smul.u32 %s377, 128
          %s379 = sshra.s32 %s48, 7
          %s380 = sand.u32 %s48, 127
          %s381 = sadd.s32 %s378, %s380
          %s382 = sld [smem:[#allocation6 + %s381]]
          %s383 = smul.u32 8, %s382
          %s384 = ssub.s32 1, %s383
          %s385 = smul.u32 16, %s384
          %p386 = scmp.lt.s32.totalorder %s383, 0
          %s387 = scalar_select %p386, %s383, 0
          %s388 = scalar_lea.vmem %s7, %s387
          %s389 = sshra.s32 %s48, 7
          %s390 = sand.u32 %s48, 127
          %s391 = sadd.s32 %s389, %s47
          %s392 = smul.u32 %s391, 128
          %s393 = sshra.s32 %s48, 7
          %s394 = sand.u32 %s48, 127
          %s395 = sadd.s32 %s392, %s394
          %s396 = sld [smem:[#allocation6 + %s395]]
          %s397 = smul.u32 8, %s396
          %s398 = ssub.s32 1, %s397
          %s399 = smul.u32 16, %s398
        $region32: #{tpu_custom_call.1} parent=15 // pred_fallthru
          _
      $region16: #{tpu_custom_call.1} parent=5 // pred_fallthru
        _
      %p400 = scmp.le.s32.totalorder 1, %s40
      %p401 = scmp.lt.s32.totalorder %s40, 7
      %p402 = pnand %p400, %p401
      %p403 = pneg %p402
      // Predicated region
      $region33: #{tpu_custom_call.1} parent=5 // pred_check
        _
      $region34: #{tpu_custom_call.1} parent=5 // pred_check_branch
        %405 = sbr.rel (%p402) target = $region36
      $region35: #{tpu_custom_call.1} parent=5 // pred_region
        %s406 = ssub.s32 %s40, 1
        %s407 = sand.u32 %s81, 1
        %s408 = scalar_lea.sflag [#allocation8], %s407
        %s409 = sand.u32 %s81, 1
        %s410 = smul.addr %s409, 16
        %s411 = scalar_lea.vmem [#allocation7], %s410
        // Predicated region
        $region37: #{tpu_custom_call.1} parent=35 // pred_check
          %p412 = pneg %p94
        $region38: #{tpu_custom_call.1} parent=35 // pred_check_branch
          %414 = sbr.rel (%p412) target = $region40
        $region39: #{tpu_custom_call.1} parent=35 // pred_region
          %415 = dma.done %s408, 256
        $region40: #{tpu_custom_call.1} parent=35 // pred_fallthru
          _
        %s416 = sand.u32 %s123, 1
        %s417 = scalar_lea.sflag [#allocation11], %s416
        %s418 = sand.u32 %s123, 1
        %s419 = smul.addr %s418, 16
        %s420 = scalar_lea.vmem [#allocation10], %s419
        // Predicated region
        $region41: #{tpu_custom_call.1} parent=35 // pred_check
          %p421 = pneg %p136
        $region42: #{tpu_custom_call.1} parent=35 // pred_check_branch
          %423 = sbr.rel (%p421) target = $region44
        $region43: #{tpu_custom_call.1} parent=35 // pred_region
          %424 = dma.done %s417, 256
        $region44: #{tpu_custom_call.1} parent=35 // pred_fallthru
          _
        %s425 = sand.u32 %s81, 1
        %s426 = scalar_lea.sflag [#allocation8], %s425
        %s427 = sand.u32 %s81, 1
        %s428 = smul.addr %s427, 16
        %s429 = scalar_lea.vmem [#allocation7], %s428
        %p430 = pneg %p94
        %p431 = pneg %p91
        %s432 = sand.u32 %s123, 1
        %s433 = scalar_lea.sflag [#allocation11], %s432
        %s434 = sand.u32 %s123, 1
        %s435 = smul.addr %s434, 16
        %s436 = scalar_lea.vmem [#allocation10], %s435
        %p437 = pneg %p136
        %p438 = pneg %p133
        %s439 = sshra.s32 %s50, 7
        %s440 = sand.u32 %s50, 127
        %s441 = sadd.s32 %s439, %s49
        %s442 = smul.u32 %s441, 128
        %s443 = sshra.s32 %s50, 7
        %s444 = sand.u32 %s50, 127
        %s445 = sadd.s32 %s442, %s444
        %s446 = sld [smem:[#allocation5 + %s445]]
        %p447 = scmp.lt.s32.totalorder %s446, 0
        %s448 = scalar_select %p447, %s446, 0
        %s449 = smul.addr %s448, 8
        %s450 = scalar_lea.vmem %s6, %s449
        %p451 = pneg %p178
        %p452 = pneg %p175
        %s453 = sshra.s32 %s50, 7
        %s454 = sand.u32 %s50, 127
        %s455 = sadd.s32 %s453, %s49
        %s456 = smul.u32 %s455, 128
        %s457 = sshra.s32 %s50, 7
        %s458 = sand.u32 %s50, 127
        %s459 = sadd.s32 %s456, %s458
        %s460 = sld [smem:[#allocation6 + %s459]]
        %s461 = smul.u32 8, %s460
        %s462 = ssub.s32 1, %s461
        %s463 = smul.u32 16, %s462
        %p464 = scmp.lt.s32.totalorder %s461, 0
        %s465 = scalar_select %p464, %s461, 0
        %s466 = scalar_lea.vmem %s7, %s465
        %p467 = pneg %p220
        %p468 = pneg %p217
        %p469 = pneg %p246
        %p470 = pneg %p243
        %s471 = sand.u32 %s233, 1
        %s472 = scalar_lea.sflag [#allocation9], %s471
        %s473 = sand.u32 %s233, 1
        %s474 = smul.addr %s473, 8
        %s475 = scalar_lea.vmem [#allocation12], %s474
        %p476 = pneg %p272
        %p477 = pneg %p269
        %s478 = sand.u32 %s259, 1
        %s479 = scalar_lea.sflag [#allocation14], %s478
        %s480 = sand.u32 %s259, 1
        %s481 = smul.addr %s480, 8
        %s482 = scalar_lea.vmem [#allocation13], %s481
        %s483 = sshra.s32 %s50, 7
        %s484 = sand.u32 %s50, 127
        %s485 = sadd.s32 %s483, %s49
        %s486 = smul.u32 %s485, 128
        %s487 = sshra.s32 %s50, 7
        %s488 = sand.u32 %s50, 127
        %s489 = sadd.s32 %s486, %s488
        %s490 = sld [smem:[#allocation4 + %s489]]
        %s491 = smul.u32 2, %s490
        %s492 = sshra.s32 %s50, 7
        %s493 = sand.u32 %s50, 127
        %s494 = sadd.s32 %s492, %s49
        %s495 = smul.u32 %s494, 128
        %s496 = sshra.s32 %s50, 7
        %s497 = sand.u32 %s50, 127
        %s498 = sadd.s32 %s495, %s497
        %s499 = sld [smem:[#allocation4 + %s498]]
        %s500 = smul.u32 2, %s499
        %s501 = sshra.s32 %s50, 7
        %s502 = sand.u32 %s50, 127
        %s503 = sadd.s32 %s501, %s49
        %s504 = smul.u32 %s503, 128
        %s505 = sshra.s32 %s50, 7
        %s506 = sand.u32 %s50, 127
        %s507 = sadd.s32 %s504, %s506
        %s508 = sld [smem:[#allocation5 + %s507]]
        %p509 = scmp.lt.s32.totalorder %s508, 0
        %s510 = scalar_select %p509, %s508, 0
        %s511 = smul.addr %s510, 8
        %s512 = scalar_lea.vmem %s6, %s511
        %s513 = sshra.s32 %s50, 7
        %s514 = sand.u32 %s50, 127
        %s515 = sadd.s32 %s513, %s49
        %s516 = smul.u32 %s515, 128
        %s517 = sshra.s32 %s50, 7
        %s518 = sand.u32 %s50, 127
        %s519 = sadd.s32 %s516, %s518
        %s520 = sld [smem:[#allocation5 + %s519]]
        %s521 = sshra.s32 %s50, 7
        %s522 = sand.u32 %s50, 127
        %s523 = sadd.s32 %s521, %s49
        %s524 = smul.u32 %s523, 128
        %s525 = sshra.s32 %s50, 7
        %s526 = sand.u32 %s50, 127
        %s527 = sadd.s32 %s524, %s526
        %s528 = sld [smem:[#allocation6 + %s527]]
        %s529 = smul.u32 8, %s528
        %s530 = ssub.s32 1, %s529
        %s531 = smul.u32 16, %s530
        %p532 = scmp.lt.s32.totalorder %s529, 0
        %s533 = scalar_select %p532, %s529, 0
        %s534 = scalar_lea.vmem %s7, %s533
        %s535 = sshra.s32 %s50, 7
        %s536 = sand.u32 %s50, 127
        %s537 = sadd.s32 %s535, %s49
        %s538 = smul.u32 %s537, 128
        %s539 = sshra.s32 %s50, 7
        %s540 = sand.u32 %s50, 127
        %s541 = sadd.s32 %s538, %s540
        %s542 = sld [smem:[#allocation6 + %s541]]
        %s543 = smul.u32 8, %s542
        %s544 = ssub.s32 1, %s543
        %s545 = smul.u32 16, %s544
        %p546 = scmp.eq.s32.totalorder %s50, 0
        // Predicated region
        $region45: #{tpu_custom_call.1} parent=35 // pred_check
          %p547 = pneg %p546
        $region46: #{tpu_custom_call.1} parent=35 // pred_check_branch
          %549 = sbr.rel (%p547) target = $region48
        $region47: #{tpu_custom_call.1} parent=35 // pred_region
          %550 = vst [vmem:[%s475] sm:$0xff] 0.0
          %551 = vst [vmem:[%s482] sm:$0xff] 0.0
        $region48: #{tpu_custom_call.1} parent=35 // pred_fallthru
          _
        %s552 = sshra.s32 %s50, 7
        %s553 = sand.u32 %s50, 127
        %s554 = sadd.s32 %s552, %s49
        %s555 = smul.u32 %s554, 128
        %s556 = sshra.s32 %s50, 7
        %s557 = sand.u32 %s50, 127
        %s558 = sadd.s32 %s555, %s557
        %s559 = sld [smem:[#allocation3 + %s558]]
        %p560 = scmp.eq.s32.totalorder %s559, 0
        // Predicated region
        $region49: #{tpu_custom_call.1} parent=35 // pred_check
          %p561 = pneg %p560
        $region50: #{tpu_custom_call.1} parent=35 // pred_check_branch
          %563 = sbr.rel (%p561) target = $region52
        $region51: #{tpu_custom_call.1} parent=35 // pred_region
          %v564 = vld [vmem:[%s475] sm:$0xff]
          %v565 = vld [vmem:[%s411] sm:$0xff]
          %v566 = vld [vmem:[%s411 + $0x8] sm:$0xff]
          %v567 = vld [vmem:[%s420] sm:$0xff]
          %v568 = vld [vmem:[%s420 + $0x8] sm:$0xff]
          %v569 = vsub.f32 %v565, %v567
          %v570 = vsub.f32 %v566, %v568
          %v571 = vmul.f32 %v569, %v569
          %v572 = vmul.f32 %v570, %v570
          %v573 = vadd.f32 %v571, %v572
          %v574 = vadd.f32 %v564, %v573
          %575 = vst [vmem:[%s475] sm:$0xff] %v574
        $region52: #{tpu_custom_call.1} parent=35 // pred_fallthru
          _
        %p576 = scmp.eq.s32.totalorder %s559, 1
        // Predicated region
        $region53: #{tpu_custom_call.1} parent=35 // pred_check
          %p577 = pneg %p576
        $region54: #{tpu_custom_call.1} parent=35 // pred_check_branch
          %579 = sbr.rel (%p577) target = $region56
        $region55: #{tpu_custom_call.1} parent=35 // pred_region
          %v580 = vld [vmem:[%s482] sm:$0xff]
          %v581 = vld [vmem:[%s512] sm:$0xff]
          %v582 = vlog2.pop %v581
          %v583 = vmul.f32 %v582, 0.6931472
          %v584 = vadd.f32 %v583, 0.0
          %v585 = vadd.f32 %v580, %v584
          %586 = vst [vmem:[%s482] sm:$0xff] %v585
        $region56: #{tpu_custom_call.1} parent=35 // pred_fallthru
          _
        %s587 = sld [smem:[#allocation6 + %s558]]
        %p588 = scmp.eq.s32.totalorder %s559, 2
        %p589 = scmp.eq.s32.totalorder %s587, 0
        %p590 = pnand %p588, %p589
        %p591 = pneg %p590
        // Predicated region
        $region57: #{tpu_custom_call.1} parent=35 // pred_check
          _
        $region58: #{tpu_custom_call.1} parent=35 // pred_check_branch
          %593 = sbr.rel (%p590) target = $region60
        $region59: #{tpu_custom_call.1} parent=35 // pred_region
          %v594 = vld [vmem:[%s482] sm:$0xff]
          %v595 = vld [vmem:[%s534] sm:$0xff]
          %v596 = vlaneseq
          %v597 = vshrl.u32 %v596, 7
          %s598 = smul.u32 %s587, 8
          %v599 = vstv %s598
          %v600 = vadd.s32 %v597, %v599
          %vm601 = vcmp.lt.s32.totalorder %v600, 1
          %v602 = vsel %vm601, %v595, 1.0
          %v603 = vlog2.pop %v602
          %v604 = vmul.f32 %v603, 0.6931472
          %v605 = vadd.f32 %v604, 0.0
          %v606 = vadd.f32 %v594, %v605
          %607 = vst [vmem:[%s482] sm:$0xff] %v606
        $region60: #{tpu_custom_call.1} parent=35 // pred_fallthru
          _
        %s608 = sand.u32 %s233, 1
        %s609 = scalar_lea.sflag [#allocation9], %s608
        %s610 = sand.u32 %s233, 1
        %s611 = smul.addr %s610, 8
        %s612 = scalar_lea.vmem [#allocation12], %s611
        %s613 = sand.u32 %s259, 1
        %s614 = scalar_lea.sflag [#allocation14], %s613
        %s615 = sand.u32 %s259, 1
        %s616 = smul.addr %s615, 8
        %s617 = scalar_lea.vmem [#allocation13], %s616
        // Predicated region
        $region61: #{tpu_custom_call.1} parent=35 // pred_check
          %p618 = pneg %p243
        $region62: #{tpu_custom_call.1} parent=35 // pred_check_branch
          %620 = sbr.rel (%p618) target = $region64
        $region63: #{tpu_custom_call.1} parent=35 // pred_region
          %s622 = ssub.s32 128, 128
          %623 = vsyncadd %s609, %s622
          %s624 = smul.addr %s49, 128
          %s625 = scalar_lea.hbm %s8, %s624
          %s627 = sshll.u32 %s612, 4
          %s628 = int_to_ptr.vmem [resolvable:$true] %s627
          %630 = dma.vmem_to_hbm [thread:$0]  %s628, 128, %s625, %s609
        $region64: #{tpu_custom_call.1} parent=35 // pred_fallthru
          _
        // Predicated region
        $region65: #{tpu_custom_call.1} parent=35 // pred_check
          %p631 = pneg %p269
        $region66: #{tpu_custom_call.1} parent=35 // pred_check_branch
          %633 = sbr.rel (%p631) target = $region68
        $region67: #{tpu_custom_call.1} parent=35 // pred_region
          %s635 = ssub.s32 128, 128
          %636 = vsyncadd %s614, %s635
          %s637 = smul.addr %s49, 128
          %s638 = scalar_lea.hbm %s9, %s637
          %s640 = sshll.u32 %s617, 4
          %s641 = int_to_ptr.vmem [resolvable:$true] %s640
          %643 = dma.vmem_to_hbm [thread:$0]  %s641, 128, %s638, %s614
        $region68: #{tpu_custom_call.1} parent=35 // pred_fallthru
          _
      $region36: #{tpu_custom_call.1} parent=5 // pred_fallthru
        _
      %p644 = scmp.le.s32.totalorder 2, %s40
      // Predicated region
      $region69: #{tpu_custom_call.1} parent=5 // pred_check
        %p645 = pneg %p644
      $region70: #{tpu_custom_call.1} parent=5 // pred_check_branch
        %647 = sbr.rel (%p645) target = $region72
      $region71: #{tpu_custom_call.1} parent=5 // pred_region
        %s648 = ssub.s32 %s40, 2
        // Predicated region
        $region73: #{tpu_custom_call.1} parent=71 // pred_check
          %p649 = pneg %p249
        $region74: #{tpu_custom_call.1} parent=71 // pred_check_branch
          %651 = sbr.rel (%p649) target = $region76
        $region75: #{tpu_custom_call.1} parent=71 // pred_region
          %s652 = sand.u32 %s234, 1
          %s653 = scalar_lea.sflag [#allocation9], %s652
          %s654 = sand.u32 %s234, 1
          %s655 = smul.addr %s654, 8
          %s656 = scalar_lea.vmem [#allocation12], %s655
          %657 = dma.done %s653, 128
        $region76: #{tpu_custom_call.1} parent=71 // pred_fallthru
          _
        // Predicated region
        $region77: #{tpu_custom_call.1} parent=71 // pred_check
          %p658 = pneg %p275
        $region78: #{tpu_custom_call.1} parent=71 // pred_check_branch
          %660 = sbr.rel (%p658) target = $region80
        $region79: #{tpu_custom_call.1} parent=71 // pred_region
          %s661 = sand.u32 %s260, 1
          %s662 = scalar_lea.sflag [#allocation14], %s661
          %s663 = sand.u32 %s260, 1
          %s664 = smul.addr %s663, 8
          %s665 = scalar_lea.vmem [#allocation13], %s664
          %666 = dma.done %s662, 128
        $region80: #{tpu_custom_call.1} parent=71 // pred_fallthru
          _
      $region72: #{tpu_custom_call.1} parent=5 // pred_fallthru
        _
    $region6: #{tpu_custom_call.1} parent=1 // loop_footer
      %s44 = sadd.s32 1, %s40
    $region7: #{tpu_custom_call.1} parent=1 // loop_footer_branch
      %39 = sbr.rel target = $region3
    $region8: #{tpu_custom_call.1} parent=1 // loop_exit
      _
    %667 = vsyncpa [#allocation8], 1
    %s668 = scalar_lea.sflag [#allocation8], 1
    %669 = vsyncpa %s668, 1
    %670 = vsyncpa [#allocation11], 1
    %s671 = scalar_lea.sflag [#allocation11], 1
    %672 = vsyncpa %s671, 1
    %673 = vsyncpa [#allocation9], 1
    %s674 = scalar_lea.sflag [#allocation9], 1
    %675 = vsyncpa %s674, 1
    %676 = vsyncpa [#allocation14], 1
    %s677 = scalar_lea.sflag [#allocation14], 1
    %678 = vsyncpa %s677, 1

</llo_original>
